<compile_context>
chip_gen: v5e
topology: v5e:2x2
jax: 0.10.0
libtpu: 0.0.40
codegen_flags: <defaults>
</compile_context>

<pallas_src>
import functools

import jax
import jax.numpy as jnp
from jax.experimental import pallas as pl
from jax.experimental.pallas import tpu as pltpu

# Constants lifted from the PyTorch source.
trainBurnIn = 0
burnIn = 0 + trainBurnIn
chunkLength = 365 + burnIn


def _percentage_loss_kernel(yhat_ref, y_ref, partial_ref, *,
                            batch, block_rows, need_mask):
    """One grid step: reduce a (TB, L) tile to a (1, L) per-lane partial sum."""
    yhat = yhat_ref[...].astype(jnp.float32)   # identity for f32, upcast for bf16
    y = y_ref[...].astype(jnp.float32)
    pct = jnp.abs(yhat - y) / y                # elementwise on VPU/EUP

    if need_mask:
        # Zero the rows of the (only) partial last block that lie past `batch`.
        # Select happens AFTER the division, so garbage/NaN never propagates.
        row = jax.lax.broadcasted_iota(jnp.int32, (block_rows, 1), 0)
        valid = (pl.program_id(0) * block_rows + row) < batch
        pct = jnp.where(valid, pct, 0.0)

    # Sublane-only reduction (rows -> 1); lanes stay dense.  The cheap
    # cross-lane finish happens once in the wrapper, not on every grid step.
    partial_ref[...] = jnp.sum(pct, axis=0, keepdims=True)


def _round_up(x, m):
    return ((x + m - 1) // m) * m


def percentage_loss(yhat, y, *, block_rows=512):
    """Pallas implementation of PercentageLoss.forward."""
    assert yhat.shape == y.shape and yhat.ndim == 2
    B, L = y.shape

    # Tile size: multiple of 8 rows, at most `block_rows`.
    tb = min(block_rows, _round_up(B, 8))
    nb = pl.cdiv(B, tb)
    need_mask = (B % tb) != 0                  # static: mask only if ragged

    kernel = functools.partial(
        _percentage_loss_kernel, batch=B, block_rows=tb, need_mask=need_mask)

    partials = pl.pallas_call(
        kernel,
        out_shape=jax.ShapeDtypeStruct((nb, L), jnp.float32),
        grid_spec=pltpu.PrefetchScalarGridSpec(
            num_scalar_prefetch=0,
            grid=(nb,),
            in_specs=[
                pl.BlockSpec((tb, L), lambda i: (i, 0)),
                pl.BlockSpec((tb, L), lambda i: (i, 0)),
            ],
            out_specs=pl.BlockSpec((1, L), lambda i: (i, 0)),
        ),
        compiler_params=pltpu.CompilerParams(
            dimension_semantics=("parallel",)),  # independent per-block partials
    )(yhat, y)

    # Tiny final reduction + normalization in plain JAX (nb x L elements).
    return jnp.sum(partials) / jnp.float32(B) / jnp.float32(chunkLength)


if __name__ == "__main__":
    # Small deterministic inputs consistent with the module: (batch, chunkLength).
    key = jax.random.PRNGKey(0)
    k1, k2 = jax.random.split(key)
    B = 13                      # deliberately not a multiple of 8 -> exercises the mask path
    L = chunkLength             # 365
    y = jax.random.uniform(k1, (B, L), dtype=jnp.float32, minval=1.0, maxval=2.0)
    yhat = y + 0.1 * jax.random.normal(k2, (B, L), dtype=jnp.float32)

    loss = percentage_loss(yhat, y)
    jax.block_until_ready(loss)

    # Reference check against plain JAX (same semantics as the torch module).
    ref = jnp.sum(jnp.abs(yhat - y) / y) / B / chunkLength
    assert jnp.allclose(loss, ref, rtol=1e-5, atol=1e-6), (loss, ref)

    print("KERNEL_OK")
</pallas_src>

<mosaic_0001>
module attributes {stable_mosaic.version = 11 : i64} {
  func.func @_percentage_loss_kernel(%arg0: i32, %arg1: memref<16x365xf32, #tpu.memory_space<vmem>>, %arg2: memref<16x365xf32, #tpu.memory_space<vmem>>, %arg3: memref<1x365xf32, #tpu.memory_space<vmem>>) attributes {dimension_semantics = [#tpu.dimension_semantics<parallel>], iteration_bounds = array<i64: 1>, scalar_prefetch = 0 : i64, scratch_operands = 0 : i64, tpu.core_type = #tpu.core_type<tc>, window_params = [{transform_indices = @transform_0, window_bounds = array<i64: 16, 365>}, {transform_indices = @transform_1, window_bounds = array<i64: 16, 365>}, {transform_indices = @transform_2, window_bounds = array<i64: 1, 365>}]} {
    %c0 = arith.constant 0 : index
    %c0_0 = arith.constant 0 : index
    %0 = vector.load %arg1[%c0, %c0_0] : memref<16x365xf32, #tpu.memory_space<vmem>>, vector<16x365xf32>
    %c0_1 = arith.constant 0 : index
    %c0_2 = arith.constant 0 : index
    %1 = vector.load %arg2[%c0_1, %c0_2] : memref<16x365xf32, #tpu.memory_space<vmem>>, vector<16x365xf32>
    %2 = arith.subf %0, %1 : vector<16x365xf32>
    %3 = math.absf %2 : vector<16x365xf32>
    %4 = arith.divf %3, %1 : vector<16x365xf32>
    %5 = tpu.iota {dimensions = array<i32: 0>} : vector<16x1xi32>
    %c16_i32 = arith.constant 16 : i32
    %6 = arith.muli %arg0, %c16_i32 : i32
    %7 = vector.broadcast %6 : i32 to vector<16x1xi32>
    %8 = arith.addi %7, %5 : vector<16x1xi32>
    %c13_i32 = arith.constant 13 : i32
    %9 = vector.broadcast %c13_i32 : i32 to vector<16x1xi32>
    %10 = arith.cmpi slt, %8, %9 : vector<16x1xi32>
    %cst = arith.constant 0.000000e+00 : f32
    %11 = vector.shape_cast %10 : vector<16x1xi1> to vector<16x1xi1>
    %12 = vector.broadcast %11 : vector<16x1xi1> to vector<16x365xi1>
    %13 = vector.broadcast %cst : f32 to vector<16x365xf32>
    %14 = arith.select %12, %4, %13 : vector<16x365xi1>, vector<16x365xf32>
    %cst_3 = arith.constant dense<0.000000e+00> : vector<365xf32>
    %15 = vector.multi_reduction <add>, %14, %cst_3 [0] : vector<16x365xf32> to vector<365xf32>
    %16 = vector.shape_cast %15 : vector<365xf32> to vector<1x365xf32>
    %c0_4 = arith.constant 0 : index
    %c0_5 = arith.constant 0 : index
    %17 = vector.load %arg3[%c0_4, %c0_5] : memref<1x365xf32, #tpu.memory_space<vmem>>, vector<1x365xf32>
    tpu.vector_store %arg3[%c0_4, %c0_5], %16 {strides = array<i32>} : memref<1x365xf32, #tpu.memory_space<vmem>>, vector<1x365xf32>,
    return
  }
  func.func @transform_0(%arg0: i32) -> (i32, i32) {
    %c0_i32 = arith.constant 0 : i32
    %c0_i32_0 = arith.constant 0 : i32
    return %arg0, %c0_i32 : i32, i32
  }
  func.func @transform_1(%arg0: i32) -> (i32, i32) {
    %c0_i32 = arith.constant 0 : i32
    %c0_i32_0 = arith.constant 0 : i32
    return %arg0, %c0_i32 : i32, i32
  }
  func.func @transform_2(%arg0: i32) -> (i32, i32) {
    %c0_i32 = arith.constant 0 : i32
    %c0_i32_0 = arith.constant 0 : i32
    return %arg0, %c0_i32 : i32, i32
  }
}

</mosaic_0001>

<llo_original>
// kernel: tpu_custom_call.1
$region0: #{tpu_custom_call.1}
  #allocation0 [shape = 'u32[]', space=smem, size = 0x4, offset = 0x4, fixed_abs, tag = 'smem constant byte address 0x4 - core index']
  #allocation1 [shape = 'u32[72,128]{1,0:T(1,128)}', space=vmem, size = 0x9000, scoped, tag = 'internal scratch']
  %s0 = inlined_call_operand.hbm [shape: f32[13,365], index: 0, kind: input, shape index: {}]
  %s1 = inlined_call_operand.hbm [shape: f32[13,365], index: 1, kind: input, shape index: {}]
  %s2 = inlined_call_operand.hbm [shape: f32[1,365], index: 2, kind: output, shape index: {}]
  %s3 = sld [smem:[#allocation0]]
  $region26: #{tpu_custom_call.1} parent=0
    _
  %s5 = ssub.s32 1, %s3
  %s6 = scalar_select 0, %s5, %s3
  $region1: #{tpu_custom_call.1} parent=0
    #allocation2 [shape = 'u8[24576]{0}', space=vmem, size = 0x6000, scoped, tag = 'input window, operand 0, single buffered']
    #allocation3 [shape = 's32[1]{0}', space=sflag, size = 0x4, scoped, tag = 'scoped memory for tpu_custom_call.1']
    #allocation4 [shape = 's32[1]{0}', space=sflag, size = 0x4, scoped, tag = 'scoped memory for tpu_custom_call.1']
    #allocation5 [shape = 'u8[24576]{0}', space=vmem, size = 0x6000, scoped, tag = 'input window, operand 1, single buffered']
    #allocation6 [shape = 's32[1]{0}', space=sflag, size = 0x4, scoped, tag = 'scoped memory for tpu_custom_call.1']
    #allocation7 [shape = 'u8[1536]{0}', space=vmem, size = 0x800, scoped, tag = 'output window, operand 0, single buffered']
    %7 = vsyncpa [#allocation3], 0
    %8 = vsyncpa [#allocation6], 0
    %9 = vsyncpa [#allocation4], 0
    // Predicated region
    $region2: #{tpu_custom_call.1} parent=1 // pred_check
      _
    $region3: #{tpu_custom_call.1} parent=1 // pred_check_branch
      %11 = sbr.rel (0) target = $region5
    $region4: #{tpu_custom_call.1} parent=1 // pred_region
      %13 = vsyncadd [#allocation3], 0
      %s14 = sshll.u32 %s0, 4
      %s15 = int_to_ptr.hbm [resolvable:$true] %s14
      %s16 = sshll.u32 [#allocation2], 4
      %s17 = int_to_ptr.vmem [resolvable:$true] %s16
      %22 = dma.hbm_to_vmem [thread:$0]  %s15, 768, %s17, [#allocation3], 384, 384, 24
    $region5: #{tpu_custom_call.1} parent=1 // pred_fallthru
      _
    // Predicated region
    $region6: #{tpu_custom_call.1} parent=1 // pred_check
      _
    $region7: #{tpu_custom_call.1} parent=1 // pred_check_branch
      %24 = sbr.rel (0) target = $region9
    $region8: #{tpu_custom_call.1} parent=1 // pred_region
      %26 = vsyncadd [#allocation6], 0
      %s27 = sshll.u32 %s1, 4
      %s28 = int_to_ptr.hbm [resolvable:$true] %s27
      %s29 = sshll.u32 [#allocation5], 4
      %s30 = int_to_ptr.vmem [resolvable:$true] %s29
      %35 = dma.hbm_to_vmem [thread:$0]  %s28, 768, %s30, [#allocation6], 384, 384, 24
    $region9: #{tpu_custom_call.1} parent=1 // pred_fallthru
      _
    // Predicated region
    $region10: #{tpu_custom_call.1} parent=1 // pred_check
      _
    $region11: #{tpu_custom_call.1} parent=1 // pred_check_branch
      %37 = sbr.rel (0) target = $region13
    $region12: #{tpu_custom_call.1} parent=1 // pred_region
      %39 = dma.done [#allocation3], 768
    $region13: #{tpu_custom_call.1} parent=1 // pred_fallthru
      _
    // Predicated region
    $region14: #{tpu_custom_call.1} parent=1 // pred_check
      _
    $region15: #{tpu_custom_call.1} parent=1 // pred_check_branch
      %41 = sbr.rel (0) target = $region17
    $region16: #{tpu_custom_call.1} parent=1 // pred_region
      %43 = dma.done [#allocation6], 768
    $region17: #{tpu_custom_call.1} parent=1 // pred_fallthru
      _
    %v44 = vld [vmem:[#allocation2] sm:$0xff]
    %v45 = vld [vmem:[#allocation2 + $0x8] sm:$0xff]
    %v46 = vld [vmem:[#allocation2 + $0x10] sm:$0xff]
    %v47 = vld [vmem:[#allocation2 + $0x18] sm:$0xff]
    %v48 = vld [vmem:[#allocation2 + $0x20] sm:$0xff]
    %v49 = vld [vmem:[#allocation2 + $0x28] sm:$0xff]
    %v50 = vld [vmem:[#allocation5] sm:$0xff]
    %v51 = vld [vmem:[#allocation5 + $0x8] sm:$0xff]
    %v52 = vld [vmem:[#allocation5 + $0x10] sm:$0xff]
    %v53 = vld [vmem:[#allocation5 + $0x18] sm:$0xff]
    %v54 = vld [vmem:[#allocation5 + $0x20] sm:$0xff]
    %v55 = vld [vmem:[#allocation5 + $0x28] sm:$0xff]
    %v56 = vsub.f32 %v44, %v50
    %v57 = vsub.f32 %v45, %v51
    %v58 = vsub.f32 %v46, %v52
    %v59 = vsub.f32 %v47, %v53
    %v60 = vsub.f32 %v48, %v54
    %v61 = vsub.f32 %v49, %v55
    %v62 = vand.u32 2147483647, %v56
    %v63 = vand.u32 2147483647, %v57
    %v64 = vand.u32 2147483647, %v58
    %v65 = vand.u32 2147483647, %v59
    %v66 = vand.u32 2147483647, %v60
    %v67 = vand.u32 2147483647, %v61
    %v68 = vrcp.pop %v50
    %v69 = vmul.f32 %v50, %v68
    %v70 = vsub.f32 1.0, %v69
    %v71 = vmul.f32 %v68, %v70
    %v72 = vadd.f32 %v68, %v71
    %vm73 = vweird.f32 %v50
    %vm74 = vweird.f32 %v68
    %vm75 = vmor %vm73, %vm74
    %v76 = vsel %vm75, %v68, %v72
    %v77 = vand.u32 2147483647, %v50
    %vm78 = vcmp.eq.f32.partialorder %v77, 8.507059e+37
    %v79 = vand.u32 %v50, 2147483648
    %v80 = vor.u32 1.1754944e-38, %v79
    %v81 = vsel %vm78, %v80, %v76
    %v82 = vmul.f32 %v62, %v81
    %v83 = vrcp.pop %v51
    %v84 = vmul.f32 %v51, %v83
    %v85 = vsub.f32 1.0, %v84
    %v86 = vmul.f32 %v83, %v85
    %v87 = vadd.f32 %v83, %v86
    %vm88 = vweird.f32 %v51
    %vm89 = vweird.f32 %v83
    %vm90 = vmor %vm88, %vm89
    %v91 = vsel %vm90, %v83, %v87
    %v92 = vand.u32 2147483647, %v51
    %vm93 = vcmp.eq.f32.partialorder %v92, 8.507059e+37
    %v94 = vand.u32 %v51, 2147483648
    %v95 = vor.u32 1.1754944e-38, %v94
    %v96 = vsel %vm93, %v95, %v91
    %v97 = vmul.f32 %v63, %v96
    %v98 = vrcp.pop %v52
    %v99 = vmul.f32 %v52, %v98
    %v100 = vsub.f32 1.0, %v99
    %v101 = vmul.f32 %v98, %v100
    %v102 = vadd.f32 %v98, %v101
    %vm103 = vweird.f32 %v52
    %vm104 = vweird.f32 %v98
    %vm105 = vmor %vm103, %vm104
    %v106 = vsel %vm105, %v98, %v102
    %v107 = vand.u32 2147483647, %v52
    %vm108 = vcmp.eq.f32.partialorder %v107, 8.507059e+37
    %v109 = vand.u32 %v52, 2147483648
    %v110 = vor.u32 1.1754944e-38, %v109
    %v111 = vsel %vm108, %v110, %v106
    %v112 = vmul.f32 %v64, %v111
    %v113 = vrcp.pop %v53
    %v114 = vmul.f32 %v53, %v113
    %v115 = vsub.f32 1.0, %v114
    %v116 = vmul.f32 %v113, %v115
    %v117 = vadd.f32 %v113, %v116
    %vm118 = vweird.f32 %v53
    %vm119 = vweird.f32 %v113
    %vm120 = vmor %vm118, %vm119
    %v121 = vsel %vm120, %v113, %v117
    %v122 = vand.u32 2147483647, %v53
    %vm123 = vcmp.eq.f32.partialorder %v122, 8.507059e+37
    %v124 = vand.u32 %v53, 2147483648
    %v125 = vor.u32 1.1754944e-38, %v124
    %v126 = vsel %vm123, %v125, %v121
    %v127 = vmul.f32 %v65, %v126
    %v128 = vrcp.pop %v54
    %v129 = vmul.f32 %v54, %v128
    %v130 = vsub.f32 1.0, %v129
    %v131 = vmul.f32 %v128, %v130
    %v132 = vadd.f32 %v128, %v131
    %vm133 = vweird.f32 %v54
    %vm134 = vweird.f32 %v128
    %vm135 = vmor %vm133, %vm134
    %v136 = vsel %vm135, %v128, %v132
    %v137 = vand.u32 2147483647, %v54
    %vm138 = vcmp.eq.f32.partialorder %v137, 8.507059e+37
    %v139 = vand.u32 %v54, 2147483648
    %v140 = vor.u32 1.1754944e-38, %v139
    %v141 = vsel %vm138, %v140, %v136
    %v142 = vmul.f32 %v66, %v141
    %v143 = vrcp.pop %v55
    %v144 = vmul.f32 %v55, %v143
    %v145 = vsub.f32 1.0, %v144
    %v146 = vmul.f32 %v143, %v145
    %v147 = vadd.f32 %v143, %v146
    %vm148 = vweird.f32 %v55
    %vm149 = vweird.f32 %v143
    %vm150 = vmor %vm148, %vm149
    %v151 = vsel %vm150, %v143, %v147
    %v152 = vand.u32 2147483647, %v55
    %vm153 = vcmp.eq.f32.partialorder %v152, 8.507059e+37
    %v154 = vand.u32 %v55, 2147483648
    %v155 = vor.u32 1.1754944e-38, %v154
    %v156 = vsel %vm153, %v155, %v151
    %v157 = vmul.f32 %v67, %v156
    %v158 = vlaneseq
    %v159 = vshrl.u32 %v158, 7
    %v160 = vadd.s32 %v159, 8
    %s161 = smul.u32 0, 16
    %v162 = vstv %s161
    %v163 = vadd.s32 %v162, %v159
    %v164 = vadd.s32 %v162, %v160
    %vm165 = vcmp.lt.s32.totalorder %v163, 13
    %vm166 = vcmp.lt.s32.totalorder %v164, 13
    %v167 = vsel %vm165, 1, 0
    %v168 = vsel %vm166, 1, 0
    %vm169 = vcmp.eq.s32.totalorder %v167, 1
    %vm170 = vcmp.eq.s32.totalorder %v168, 1
    %v171 = vsel %vm169, %v82, 0.0
    %v172 = vsel %vm169, %v97, 0.0
    %v173 = vsel %vm169, %v112, 0.0
    %v174 = vsel %vm170, %v127, 0.0
    %v175 = vsel %vm170, %v142, 0.0
    %v176 = vsel %vm170, %v157, 0.0
    %v177 = vadd.f32 %v171, %v174
    %v178 = vrot.slane %v177, 4
    %v179 = vadd.f32 %v177, %v178
    %v180 = vrot.slane %v179, 2
    %v181 = vadd.f32 %v179, %v180
    %v182 = vrot.slane %v181, 1
    %v183 = vadd.f32 %v181, %v182
    %v184 = vadd.f32 %v172, %v175
    %v185 = vrot.slane %v184, 4
    %v186 = vadd.f32 %v184, %v185
    %v187 = vrot.slane %v186, 2
    %v188 = vadd.f32 %v186, %v187
    %v189 = vrot.slane %v188, 1
    %v190 = vadd.f32 %v188, %v189
    %vm191 = vcmask 891904
    %v192 = vsel %vm191, %v173, 0.0
    %v193 = vsel %vm191, %v176, 0.0
    %v194 = vadd.f32 %v192, %v193
    %v195 = vrot.slane %v194, 4
    %v196 = vadd.f32 %v194, %v195
    %v197 = vrot.slane %v196, 2
    %v198 = vadd.f32 %v196, %v197
    %v199 = vrot.slane %v198, 1
    %v200 = vadd.f32 %v198, %v199
    %v204 = vrot.slane %v190, 7
    %v205 = vrot.slane %v200, 6
    %vm206 = vcmask 1040384
    %v207 = vsel %vm206, %v183, %v204
    %vm208 = vcmask 1041408
    %v209 = vsel %vm208, %v207, %v205
    %v211 = vlaneseq
    %vm212 = vcmp.ge.s32.totalorder %v211, 0
    %vm213 = vcmp.lt.s32.totalorder %v211, 365
    %vm214 = vmand %vm212, %vm213
    %215 = vst.msk [vmem:[#allocation7] sm:$0x7] %vm214, %v209
    // Predicated region
    $region18: #{tpu_custom_call.1} parent=1 // pred_check
      _
    $region19: #{tpu_custom_call.1} parent=1 // pred_check_branch
      %217 = sbr.rel (0) target = $region21
    $region20: #{tpu_custom_call.1} parent=1 // pred_region
      %219 = vsyncadd [#allocation4], 0
      %s221 = sshll.u32 [#allocation7], 4
      %s222 = int_to_ptr.vmem [resolvable:$true] %s221
      %s223 = sshll.u32 %s2, 4
      %s224 = int_to_ptr.hbm [resolvable:$true] %s223
      %226 = dma.vmem_to_hbm [thread:$0]  %s222, 48, %s224, [#allocation4]
    $region21: #{tpu_custom_call.1} parent=1 // pred_fallthru
      _
    // Predicated region
    $region22: #{tpu_custom_call.1} parent=1 // pred_check
      _
    $region23: #{tpu_custom_call.1} parent=1 // pred_check_branch
      %228 = sbr.rel (0) target = $region25
    $region24: #{tpu_custom_call.1} parent=1 // pred_region
      %230 = dma.done [#allocation4], 48
    $region25: #{tpu_custom_call.1} parent=1 // pred_fallthru
      _
    %231 = vsyncpa [#allocation3], 1
    %232 = vsyncpa [#allocation6], 1
    %233 = vsyncpa [#allocation4], 1

</llo_original>
